<compile_context>
chip_gen: v7x
topology: tpu7x:2x2x1
jax: 0.10.0
libtpu: 0.0.40
codegen_flags: <defaults>
</compile_context>

<pallas_src>
import math
import functools

import jax
import jax.numpy as jnp
from jax.experimental import pallas as pl
from jax.experimental.pallas import tpu as pltpu


def _round_up(x, m):
    return ((x + m - 1) // m) * m


def _choose_tile_b(bs, tile_b):
    """Pick a batch tile: 16-row aligned (bf16 sublane packing), capped at 1024,
    >= 2 grid steps when possible (v7x megacore), 256-aligned when large."""
    tile_b = max(16, min(int(tile_b), 1024))
    tile_b = _round_up(tile_b, 16)
    if bs > 16:
        two_step = _round_up(pl.cdiv(bs, 2), 16)
        tile_b = min(tile_b, two_step)
    else:
        tile_b = 16
    if tile_b >= 256:
        tile_b = (tile_b // 256) * 256   # keep the final MXU M-pass unragged
    return tile_b


# -----------------------------------------------------------------------------
# Kernel
# -----------------------------------------------------------------------------
def metanet_kernel(y_ref, hx_ref, w1h_ref, t_ref, b12_ref, w2_ref, w3p_ref,
                   b3p_ref, out_ref, *, num_classes, skip):
    tb = out_ref.shape[0]
    c_pad = out_ref.shape[1]

    # One-hot of labels over the padded (lane-dense) class axis; reused for the
    # embedding matmul and the skip blend.
    y = y_ref[...]                                                  # (tb, 1) i32
    lane = jax.lax.broadcasted_iota(jnp.int32, (tb, c_pad), 1)      # (tb, c_pad)
    onehot = (lane == y).astype(jnp.float32)                        # (tb, c_pad)

    # Layer 1: cat([hx, emb(y)]) @ W1 + b1  ==  hx @ W1h + onehot @ (emb @ W1e) + b1
    h = (jnp.dot(hx_ref[...], w1h_ref[...],
                 preferred_element_type=jnp.float32)
         + jnp.dot(onehot.astype(jnp.bfloat16), t_ref[...],
                   preferred_element_type=jnp.float32)
         + b12_ref[0:1, :])
    h = jnp.tanh(h)
    # TODO(synk): nn.Dropout(p=0.3) is identity in eval mode; not applied.

    # Layer 2 + Tanh
    h = jnp.dot(h.astype(jnp.bfloat16), w2_ref[...],
                preferred_element_type=jnp.float32) + b12_ref[1:2, :]
    h = jnp.tanh(h)
    # eval-mode BatchNorm1d is folded into w3p/b3p in the wrapper.

    # Final linear (BN-folded, lane-dense c_pad columns: classes, skip col, zeros)
    logit_all = (jnp.dot(h.astype(jnp.bfloat16), w3p_ref[...],
                         preferred_element_type=jnp.float32) + b3p_ref[...])

    # Softmax over the real class lanes only.
    # TODO(synk): args.sparsemax branch not implemented; softmax path used.
    cls_mask = lane < num_classes
    logit = jnp.where(cls_mask, logit_all, -1e30)
    m = jnp.max(logit, axis=-1, keepdims=True)
    e = jnp.exp(logit - m)
    inv_denom = pl.reciprocal(jnp.sum(e, axis=-1, keepdims=True), approx=True)

    if skip:
        # skip-gate pre-activation lives in lane `num_classes`; pick it with a
        # VPU select + lane reduce (no mid-vreg slicing).
        skip_sel = (lane == num_classes).astype(jnp.float32)
        alpha_pre = jnp.sum(logit_all * skip_sel, axis=-1, keepdims=True)
        alpha = jax.nn.sigmoid(alpha_pre)
        # TODO(synk): module caches alpha.mean() as self.alpha (get_alpha); not returned.
        # Fold the softmax reciprocal into the (1 - alpha) blend scale.
        out = e * ((1.0 - alpha) * inv_denom) + alpha * onehot
    else:
        out = e * inv_denom

    out_ref[...] = out.astype(out_ref.dtype)


# -----------------------------------------------------------------------------
# Wrapper
# -----------------------------------------------------------------------------
def metanet_forward(hx, y, prep, *, num_classes, skip, tile_b=512):
    bs, hx_dim = hx.shape
    c_pad = prep["w3p"].shape[1]

    tile_b = _choose_tile_b(bs, tile_b)
    bs_pad = _round_up(bs, tile_b)

    hx = hx.astype(jnp.bfloat16)            # bf16 MXU operand: halve hx DMA bytes
    if bs_pad != bs:
        # Padded rows (hx=0, y=0) produce finite garbage that is sliced off below;
        # do not reduce over them (e.g. if alpha.mean is ever added).
        hx = jnp.pad(hx, ((0, bs_pad - bs), (0, 0)))
        y = jnp.pad(y, (0, bs_pad - bs))
    y2 = y.reshape(bs_pad, 1).astype(jnp.int32)

    grid = (bs_pad // tile_b,)

    def const_spec(arr):
        # Constant index_map: weights stay VMEM-resident across grid steps.
        return pl.BlockSpec(arr.shape, lambda i: (0, 0))

    out = pl.pallas_call(
        functools.partial(metanet_kernel, num_classes=num_classes, skip=skip),
        out_shape=jax.ShapeDtypeStruct((bs_pad, c_pad), jnp.bfloat16),
        grid=grid,
        in_specs=[
            pl.BlockSpec((tile_b, 1), lambda i: (i, 0)),        # y
            pl.BlockSpec((tile_b, hx_dim), lambda i: (i, 0)),   # hx (bf16)
            const_spec(prep["w1h"]),
            const_spec(prep["t"]),
            const_spec(prep["b12"]),
            const_spec(prep["w2"]),
            const_spec(prep["w3p"]),
            const_spec(prep["b3p"]),
        ],
        out_specs=pl.BlockSpec((tile_b, c_pad), lambda i: (i, 0)),
        compiler_params=pltpu.CompilerParams(
            dimension_semantics=("parallel",),
            vmem_limit_bytes=32 * 1024 * 1024,
        ),
    )(y2, hx, prep["w1h"], prep["t"], prep["b12"], prep["w2"],
      prep["w3p"], prep["b3p"])

    # Slice away padded rows / lanes; upcast the bf16 store back to f32.
    return out[:bs, :num_classes].astype(jnp.float32)


# -----------------------------------------------------------------------------
# Parameter construction / preparation
# -----------------------------------------------------------------------------
def xavier_normal(key, in_dim, out_dim):
    std = math.sqrt(2.0 / (in_dim + out_dim))
    return std * jax.random.normal(key, (in_dim, out_dim), jnp.float32)


def make_params(key, hx_dim, cls_dim, h_dim, num_classes, skip):
    """PyTorch-module-equivalent parameters (weights stored [in, out])."""
    in_dim = hx_dim + cls_dim
    out_dim = num_classes + int(skip)
    k_emb, k1, k2, k3 = jax.random.split(key, 4)
    return {
        "emb": jax.random.normal(k_emb, (num_classes, cls_dim), jnp.float32),
        "w1": xavier_normal(k1, in_dim, h_dim),
        "b1": jnp.zeros((h_dim,), jnp.float32),
        "w2": xavier_normal(k2, h_dim, h_dim),
        "b2": jnp.zeros((h_dim,), jnp.float32),
        "bn_g": jnp.ones((h_dim,), jnp.float32),
        "bn_b": jnp.zeros((h_dim,), jnp.float32),
        "bn_m": jnp.zeros((h_dim,), jnp.float32),
        "bn_v": jnp.ones((h_dim,), jnp.float32),
        "w3": xavier_normal(k3, h_dim, out_dim),
        "b3": jnp.zeros((out_dim,), jnp.float32),
    }


def prepare_params(params, *, hx_dim, num_classes, skip, eps=1e-5):
    """Wrapper-side folds: split W1, T = emb @ W1e, fold eval BN into the final
    linear, zero-pad h_dim and the class width to lane-dense multiples of 128,
    cast MXU operands to bf16."""
    h_dim = params["w2"].shape[0]
    h_pad = _round_up(h_dim, 128)
    out_cols = num_classes + int(skip)
    c_pad = _round_up(out_cols, 128)        # derived, not hardcoded

    w1 = params["w1"]                                                 # (hx+cls, h)
    w1h = jnp.zeros((hx_dim, h_pad), jnp.float32).at[:, :h_dim].set(w1[:hx_dim, :])
    t = params["emb"] @ w1[hx_dim:, :]                                # (C, h)
    t_pad = jnp.zeros((c_pad, h_pad), jnp.float32).at[:num_classes, :h_dim].set(t)

    b12 = jnp.zeros((2, h_pad), jnp.float32)
    b12 = b12.at[0, :h_dim].set(params["b1"]).at[1, :h_dim].set(params["b2"])

    w2p = jnp.zeros((h_pad, h_pad), jnp.float32).at[:h_dim, :h_dim].set(params["w2"])

    scale = params["bn_g"] * jax.lax.rsqrt(params["bn_v"] + eps)      # (h,)
    shift = params["bn_b"] - params["bn_m"] * scale                   # (h,)
    w3f = params["w3"] * scale[:, None]                               # (h, out_cols)
    b3f = params["b3"] + shift @ params["w3"]                         # (out_cols,)

    w3p = jnp.zeros((h_pad, c_pad), jnp.float32).at[:h_dim, :out_cols].set(w3f)
    b3p = jnp.zeros((1, c_pad), jnp.float32).at[0, :out_cols].set(b3f)

    return {
        "w1h": w1h.astype(jnp.bfloat16),
        "t": t_pad.astype(jnp.bfloat16),
        "b12": b12,
        "w2": w2p.astype(jnp.bfloat16),
        "w3p": w3p.astype(jnp.bfloat16),
        "b3p": b3p,
    }


# -----------------------------------------------------------------------------
# References
# -----------------------------------------------------------------------------
def metanet_reference(hx, y, params, *, num_classes, skip):
    """Pure-JAX f32 reference with original module semantics (eval mode)."""
    y_emb = params["emb"][y]
    hin = jnp.concatenate([hx, y_emb], axis=-1)
    h = jnp.tanh(hin @ params["w1"] + params["b1"])
    h = jnp.tanh(h @ params["w2"] + params["b2"])
    h = ((h - params["bn_m"]) * jax.lax.rsqrt(params["bn_v"] + 1e-5)
         * params["bn_g"] + params["bn_b"])
    logit_full = h @ params["w3"] + params["b3"]
    logit = logit_full[:, :num_classes]
    out = jax.nn.softmax(logit, axis=-1)
    if skip:
        alpha = jax.nn.sigmoid(logit_full[:, num_classes:num_classes + 1])
        out = (1.0 - alpha) * out + alpha * jax.nn.one_hot(y, num_classes,
                                                           dtype=out.dtype)
    return out


def metanet_reference_prepared(hx, y, prep, *, num_classes, skip):
    """Pure-JAX reference that mirrors the kernel math (bf16 MXU operands,
    folded BN, padded lanes, bf16 output store) for a tight structural check."""
    c_pad = prep["w3p"].shape[1]
    onehot = jax.nn.one_hot(y, c_pad, dtype=jnp.float32)
    h = (jnp.dot(hx.astype(jnp.bfloat16), prep["w1h"],
                 preferred_element_type=jnp.float32)
         + jnp.dot(onehot.astype(jnp.bfloat16), prep["t"],
                   preferred_element_type=jnp.float32)
         + prep["b12"][0:1, :])
    h = jnp.tanh(h)
    h = jnp.tanh(jnp.dot(h.astype(jnp.bfloat16), prep["w2"],
                         preferred_element_type=jnp.float32) + prep["b12"][1:2, :])
    logit_all = (jnp.dot(h.astype(jnp.bfloat16), prep["w3p"],
                         preferred_element_type=jnp.float32) + prep["b3p"])
    lane = jnp.arange(c_pad)[None, :]
    logit = jnp.where(lane < num_classes, logit_all, -1e30)
    sm = jax.nn.softmax(logit, axis=-1)
    out = sm
    if skip:
        alpha = jax.nn.sigmoid(
            jnp.sum(logit_all * (lane == num_classes), axis=-1, keepdims=True))
        out = (1.0 - alpha) * sm + alpha * onehot
    out = out.astype(jnp.bfloat16).astype(jnp.float32)   # match kernel's bf16 store
    return out[:, :num_classes]


# -----------------------------------------------------------------------------
if __name__ == "__main__":
    bs, hx_dim, cls_dim, h_dim, num_classes = 32, 16, 16, 32, 10
    skip = True

    key = jax.random.PRNGKey(0)
    k_hx, k_y, k_p = jax.random.split(key, 3)
    hx = jax.random.normal(k_hx, (bs, hx_dim), jnp.float32)
    y = jax.random.randint(k_y, (bs,), 0, num_classes, jnp.int32)

    params = make_params(k_p, hx_dim, cls_dim, h_dim, num_classes, skip)
    prep = prepare_params(params, hx_dim=hx_dim, num_classes=num_classes, skip=skip)

    # tile_b=16 so the 32-row batch exercises a 2-step parallel grid.
    out = metanet_forward(hx, y, prep, num_classes=num_classes, skip=skip, tile_b=16)
    out = jax.block_until_ready(out)
    assert out.shape == (bs, num_classes)

    ref_match = metanet_reference_prepared(hx, y, prep,
                                           num_classes=num_classes, skip=skip)
    ref_f32 = metanet_reference(hx, y, params, num_classes=num_classes, skip=skip)

    # Tolerances account for the bf16 output store and approx reciprocal.
    assert jnp.allclose(out, ref_match, atol=1e-2), "mismatch vs bf16-matched reference"
    assert jnp.allclose(out, ref_f32, atol=5e-2), "mismatch vs f32 module reference"

    print("KERNEL_OK")
</pallas_src>

<mosaic_0001>
module attributes {stable_mosaic.version = 11 : i64} {
  func.func @metanet_kernel(%arg0: i32, %arg1: memref<16x1xi32, #tpu.memory_space<vmem>>, %arg2: memref<16x16xbf16, #tpu.memory_space<vmem>>, %arg3: memref<16x128xbf16, #tpu.memory_space<vmem>>, %arg4: memref<128x128xbf16, #tpu.memory_space<vmem>>, %arg5: memref<2x128xf32, #tpu.memory_space<vmem>>, %arg6: memref<128x128xbf16, #tpu.memory_space<vmem>>, %arg7: memref<128x128xbf16, #tpu.memory_space<vmem>>, %arg8: memref<1x128xf32, #tpu.memory_space<vmem>>, %arg9: memref<16x128xbf16, #tpu.memory_space<vmem>>) attributes {dimension_semantics = [#tpu.dimension_semantics<parallel>], iteration_bounds = array<i64: 2>, scalar_prefetch = 0 : i64, scratch_operands = 0 : i64, tpu.core_type = #tpu.core_type<tc>, window_params = [{transform_indices = @transform_0, window_bounds = array<i64: 16, 1>}, {transform_indices = @transform_1, window_bounds = array<i64: 16, 16>}, {pipeline_mode = #tpu.pipeline_mode<synchronous>, transform_indices = @transform_2, window_bounds = array<i64: 16, 128>}, {pipeline_mode = #tpu.pipeline_mode<synchronous>, transform_indices = @transform_3, window_bounds = array<i64: 128, 128>}, {pipeline_mode = #tpu.pipeline_mode<synchronous>, transform_indices = @transform_4, window_bounds = array<i64: 2, 128>}, {pipeline_mode = #tpu.pipeline_mode<synchronous>, transform_indices = @transform_5, window_bounds = array<i64: 128, 128>}, {pipeline_mode = #tpu.pipeline_mode<synchronous>, transform_indices = @transform_6, window_bounds = array<i64: 128, 128>}, {pipeline_mode = #tpu.pipeline_mode<synchronous>, transform_indices = @transform_7, window_bounds = array<i64: 1, 128>}, {transform_indices = @transform_8, window_bounds = array<i64: 16, 128>}]} {
    %c0 = arith.constant 0 : index
    %c0_0 = arith.constant 0 : index
    %0 = vector.load %arg1[%c0, %c0_0] : memref<16x1xi32, #tpu.memory_space<vmem>>, vector<16x1xi32>
    %1 = tpu.iota {dimensions = array<i32: 1>} : vector<16x128xi32>
    %2 = vector.broadcast %0 : vector<16x1xi32> to vector<16x128xi32>
    %3 = arith.cmpi eq, %1, %2 : vector<16x128xi32>
    %4 = arith.extui %3 : vector<16x128xi1> to vector<16x128xi32>
    %5 = arith.sitofp %4 : vector<16x128xi32> to vector<16x128xf32>
    %c0_1 = arith.constant 0 : index
    %c0_2 = arith.constant 0 : index
    %6 = vector.load %arg2[%c0_1, %c0_2] : memref<16x16xbf16, #tpu.memory_space<vmem>>, vector<16x16xbf16>
    %c0_3 = arith.constant 0 : index
    %c0_4 = arith.constant 0 : index
    %7 = vector.load %arg3[%c0_3, %c0_4] : memref<16x128xbf16, #tpu.memory_space<vmem>>, vector<16x128xbf16>
    %cst = arith.constant dense<0.000000e+00> : vector<16x128xf32>
    %8 = tpu.matmul %6, %7, %cst {dimension_numbers = #tpu.dot_dimension_numbers<[1], [0], [0], [1], [0, 0, 1, 1], [], []>} : vector<16x16xbf16>, vector<16x128xbf16>, vector<16x128xf32> -> vector<16x128xf32>
    %9 = arith.truncf %5 : vector<16x128xf32> to vector<16x128xbf16>
    %c0_5 = arith.constant 0 : index
    %c0_6 = arith.constant 0 : index
    %10 = vector.load %arg4[%c0_5, %c0_6] : memref<128x128xbf16, #tpu.memory_space<vmem>>, vector<128x128xbf16>
    %cst_7 = arith.constant dense<0.000000e+00> : vector<16x128xf32>
    %11 = tpu.matmul %9, %10, %cst_7 {dimension_numbers = #tpu.dot_dimension_numbers<[1], [0], [0], [1], [0, 0, 1, 1], [], []>} : vector<16x128xbf16>, vector<128x128xbf16>, vector<16x128xf32> -> vector<16x128xf32>
    %12 = arith.addf %8, %11 : vector<16x128xf32>
    %c0_8 = arith.constant 0 : index
    %c0_9 = arith.constant 0 : index
    %13 = vector.load %arg5[%c0_8, %c0_9] : memref<2x128xf32, #tpu.memory_space<vmem>>, vector<1x128xf32>
    %14 = vector.broadcast %13 : vector<1x128xf32> to vector<16x128xf32>
    %15 = arith.addf %12, %14 : vector<16x128xf32>
    %16 = math.tanh %15 : vector<16x128xf32>
    %17 = arith.truncf %16 : vector<16x128xf32> to vector<16x128xbf16>
    %c0_10 = arith.constant 0 : index
    %c0_11 = arith.constant 0 : index
    %18 = vector.load %arg6[%c0_10, %c0_11] : memref<128x128xbf16, #tpu.memory_space<vmem>>, vector<128x128xbf16>
    %cst_12 = arith.constant dense<0.000000e+00> : vector<16x128xf32>
    %19 = tpu.matmul %17, %18, %cst_12 {dimension_numbers = #tpu.dot_dimension_numbers<[1], [0], [0], [1], [0, 0, 1, 1], [], []>} : vector<16x128xbf16>, vector<128x128xbf16>, vector<16x128xf32> -> vector<16x128xf32>
    %c1 = arith.constant 1 : index
    %c0_13 = arith.constant 0 : index
    %20 = vector.load %arg5[%c1, %c0_13] : memref<2x128xf32, #tpu.memory_space<vmem>>, vector<1x128xf32>
    %21 = vector.broadcast %20 : vector<1x128xf32> to vector<16x128xf32>
    %22 = arith.addf %19, %21 : vector<16x128xf32>
    %23 = math.tanh %22 : vector<16x128xf32>
    %24 = arith.truncf %23 : vector<16x128xf32> to vector<16x128xbf16>
    %c0_14 = arith.constant 0 : index
    %c0_15 = arith.constant 0 : index
    %25 = vector.load %arg7[%c0_14, %c0_15] : memref<128x128xbf16, #tpu.memory_space<vmem>>, vector<128x128xbf16>
    %cst_16 = arith.constant dense<0.000000e+00> : vector<16x128xf32>
    %26 = tpu.matmul %24, %25, %cst_16 {dimension_numbers = #tpu.dot_dimension_numbers<[1], [0], [0], [1], [0, 0, 1, 1], [], []>} : vector<16x128xbf16>, vector<128x128xbf16>, vector<16x128xf32> -> vector<16x128xf32>
    %c0_17 = arith.constant 0 : index
    %c0_18 = arith.constant 0 : index
    %27 = vector.load %arg8[%c0_17, %c0_18] : memref<1x128xf32, #tpu.memory_space<vmem>>, vector<1x128xf32>
    %28 = vector.broadcast %27 : vector<1x128xf32> to vector<16x128xf32>
    %29 = arith.addf %26, %28 : vector<16x128xf32>
    %c10_i32 = arith.constant 10 : i32
    %30 = vector.broadcast %c10_i32 : i32 to vector<16x128xi32>
    %31 = arith.cmpi slt, %1, %30 : vector<16x128xi32>
    %cst_19 = arith.constant -1.000000e+30 : f32
    %32 = vector.broadcast %cst_19 : f32 to vector<16x128xf32>
    %33 = arith.select %31, %29, %32 : vector<16x128xi1>, vector<16x128xf32>
    %cst_20 = arith.constant dense<0xFF800000> : vector<16xf32>
    %34 = vector.multi_reduction <maximumf>, %33, %cst_20 [1] : vector<16x128xf32> to vector<16xf32>
    %35 = vector.shape_cast %34 : vector<16xf32> to vector<16x1xf32>
    %36 = vector.broadcast %35 : vector<16x1xf32> to vector<16x128xf32>
    %37 = arith.subf %33, %36 : vector<16x128xf32>
    %38 = math.exp %37 : vector<16x128xf32>
    %cst_21 = arith.constant dense<0.000000e+00> : vector<16xf32>
    %39 = vector.multi_reduction <add>, %38, %cst_21 [1] : vector<16x128xf32> to vector<16xf32>
    %40 = vector.shape_cast %39 : vector<16xf32> to vector<16x1xf32>
    %41 = tpu.reciprocal %40 {approx = true} : vector<16x1xf32> -> vector<16x1xf32>
    %c10_i32_22 = arith.constant 10 : i32
    %42 = vector.broadcast %c10_i32_22 : i32 to vector<16x128xi32>
    %43 = arith.cmpi eq, %1, %42 : vector<16x128xi32>
    %44 = arith.extui %43 : vector<16x128xi1> to vector<16x128xi32>
    %45 = arith.sitofp %44 : vector<16x128xi32> to vector<16x128xf32>
    %46 = arith.mulf %29, %45 : vector<16x128xf32>
    %cst_23 = arith.constant dense<0.000000e+00> : vector<16xf32>
    %47 = vector.multi_reduction <add>, %46, %cst_23 [1] : vector<16x128xf32> to vector<16xf32>
    %48 = vector.shape_cast %47 : vector<16xf32> to vector<16x1xf32>
    %49 = arith.negf %48 : vector<16x1xf32>
    %50 = math.exp %49 : vector<16x1xf32>
    %cst_24 = arith.constant 1.000000e+00 : f32
    %51 = vector.broadcast %cst_24 : f32 to vector<16x1xf32>
    %52 = arith.addf %51, %50 : vector<16x1xf32>
    %53 = arith.divf %51, %52 : vector<16x1xf32>
    %cst_25 = arith.constant 1.000000e+00 : f32
    %54 = vector.broadcast %cst_25 : f32 to vector<16x1xf32>
    %55 = arith.subf %54, %53 : vector<16x1xf32>
    %56 = arith.mulf %55, %41 : vector<16x1xf32>
    %57 = vector.broadcast %56 : vector<16x1xf32> to vector<16x128xf32>
    %58 = arith.mulf %38, %57 : vector<16x128xf32>
    %59 = vector.broadcast %53 : vector<16x1xf32> to vector<16x128xf32>
    %60 = arith.mulf %59, %5 : vector<16x128xf32>
    %61 = arith.addf %58, %60 : vector<16x128xf32>
    %62 = arith.truncf %61 : vector<16x128xf32> to vector<16x128xbf16>
    %c0_26 = arith.constant 0 : index
    %c0_27 = arith.constant 0 : index
    %63 = vector.load %arg9[%c0_26, %c0_27] : memref<16x128xbf16, #tpu.memory_space<vmem>>, vector<16x128xbf16>
    tpu.vector_store %arg9[%c0_26, %c0_27], %62 {strides = array<i32>} : memref<16x128xbf16, #tpu.memory_space<vmem>>, vector<16x128xbf16>,
    return
  }
  func.func @transform_0(%arg0: i32) -> (i32, i32) {
    %c0_i32 = arith.constant 0 : i32
    %c0_i32_0 = arith.constant 0 : i32
    return %arg0, %c0_i32 : i32, i32
  }
  func.func @transform_1(%arg0: i32) -> (i32, i32) {
    %c0_i32 = arith.constant 0 : i32
    %c0_i32_0 = arith.constant 0 : i32
    return %arg0, %c0_i32 : i32, i32
  }
  func.func @transform_2(%arg0: i32) -> (i32, i32) {
    %c0_i32 = arith.constant 0 : i32
    %c0_i32_0 = arith.constant 0 : i32
    %c0_i32_1 = arith.constant 0 : i32
    return %c0_i32, %c0_i32_0 : i32, i32
  }
  func.func @transform_3(%arg0: i32) -> (i32, i32) {
    %c0_i32 = arith.constant 0 : i32
    %c0_i32_0 = arith.constant 0 : i32
    %c0_i32_1 = arith.constant 0 : i32
    return %c0_i32, %c0_i32_0 : i32, i32
  }
  func.func @transform_4(%arg0: i32) -> (i32, i32) {
    %c0_i32 = arith.constant 0 : i32
    %c0_i32_0 = arith.constant 0 : i32
    %c0_i32_1 = arith.constant 0 : i32
    return %c0_i32, %c0_i32_0 : i32, i32
  }
  func.func @transform_5(%arg0: i32) -> (i32, i32) {
    %c0_i32 = arith.constant 0 : i32
    %c0_i32_0 = arith.constant 0 : i32
    %c0_i32_1 = arith.constant 0 : i32
    return %c0_i32, %c0_i32_0 : i32, i32
  }
  func.func @transform_6(%arg0: i32) -> (i32, i32) {
    %c0_i32 = arith.constant 0 : i32
    %c0_i32_0 = arith.constant 0 : i32
    %c0_i32_1 = arith.constant 0 : i32
    return %c0_i32, %c0_i32_0 : i32, i32
  }
  func.func @transform_7(%arg0: i32) -> (i32, i32) {
    %c0_i32 = arith.constant 0 : i32
    %c0_i32_0 = arith.constant 0 : i32
    %c0_i32_1 = arith.constant 0 : i32
    return %c0_i32, %c0_i32_0 : i32, i32
  }
  func.func @transform_8(%arg0: i32) -> (i32, i32) {
    %c0_i32 = arith.constant 0 : i32
    %c0_i32_0 = arith.constant 0 : i32
    return %arg0, %c0_i32 : i32, i32
  }
}

</mosaic_0001>

<llo_original>
// kernel: tpu_custom_call.1
$region0: #{tpu_custom_call.1}
  #allocation0 [shape = 'u32[]', space=smem, size = 0x4, offset = 0x4, fixed_abs, tag = 'smem constant byte address 0x4 - core index']
  #allocation1 [shape = 'u32[144,128]{1,0:T(1,128)}', space=vmem, size = 0x12000, scoped, tag = 'internal scratch']
  %s0 = inlined_call_operand.vmem [shape: s32[32,1], index: 0, kind: input, shape index: {}]
  %s1 = inlined_call_operand.vmem [shape: bf16[32,16], index: 1, kind: input, shape index: {}]
  %s2 = inlined_call_operand.hbm [shape: bf16[16,128], index: 2, kind: input, shape index: {}]
  %s3 = inlined_call_operand.vmem [shape: bf16[128,128], index: 3, kind: input, shape index: {}]
  %s4 = inlined_call_operand.vmem [shape: f32[2,128], index: 4, kind: input, shape index: {}]
  %s5 = inlined_call_operand.hbm [shape: bf16[128,128], index: 5, kind: input, shape index: {}]
  %s6 = inlined_call_operand.hbm [shape: bf16[128,128], index: 6, kind: input, shape index: {}]
  %s7 = inlined_call_operand.vmem [shape: f32[1,128], index: 7, kind: input, shape index: {}]
  %s8 = inlined_call_operand.hbm [shape: bf16[32,128], index: 8, kind: output, shape index: {}]
  %s9 = sld [smem:[#allocation0]]
  $region77: #{tpu_custom_call.1} parent=0
    _
  %s11 = ssub.s32 1, %s9
  %s12 = scalar_select 0, %s11, %s9
  $region1: #{tpu_custom_call.1} parent=0
    #allocation2 [shape = 'u8[4096]{0}', space=vmem, size = 0x1000, scoped, tag = 'input window, operand 2, single buffered']
    #allocation3 [shape = 's32[2]{0}', space=sflag, size = 0x8, scoped, tag = 'scoped memory for tpu_custom_call.1']
    #allocation4 [shape = 's32[2]{0}', space=sflag, size = 0x8, scoped, tag = 'scoped memory for tpu_custom_call.1']
    #allocation5 [shape = 'u8[32768]{0}', space=vmem, size = 0x8000, scoped, tag = 'input window, operand 5, single buffered']
    #allocation6 [shape = 's32[1]{0}', space=sflag, size = 0x4, scoped, tag = 'scoped memory for tpu_custom_call.1']
    #allocation7 [shape = 'u8[32768]{0}', space=vmem, size = 0x8000, scoped, tag = 'input window, operand 6, single buffered']
    #allocation8 [shape = 'u8[8192]{0}', space=vmem, size = 0x2000, scoped, tag = 'output window, operand 0']
    %13 = vsyncpa [#allocation3], 0
    %14 = vsyncpa [#allocation6], 0
    %15 = vsyncpa [#allocation4], 0
    %s16 = scalar_lea.sflag [#allocation4], 1
    %17 = vsyncpa %s16, 0
    loop: start=0, step=1, limit=4
    $region2: #{tpu_custom_call.1} parent=1 // loop_pre_header
      _
    $region3: #{tpu_custom_call.1} parent=1 // loop_header
      %s19 = sphi 0, %s23
      %p20 = scmp.ge.s32.totalorder %s19, 4
      %s29 = sphi 0, %s31
      %s32 = sphi 0, %s29
      %s33 = sphi 0, %s32
      %s49 = sphi 0, %s33
      %s55 = sphi 0, %s57
      %s58 = sphi 0, %s55
      %s59 = sphi 0, %s58
      %s75 = sphi 0, %s59
      %s79 = sphi 0, %s79
      %s81 = sphi 0, %s79
      %s82 = sphi 0, %s81
      %s96 = sphi 0, %s82
      %s100 = sphi 0, %s100
      %s102 = sphi 0, %s100
      %s103 = sphi 0, %s102
      %s117 = sphi 0, %s103
      %s121 = sphi 0, %s121
      %s123 = sphi 0, %s121
      %s124 = sphi 0, %s123
      %s138 = sphi 0, %s124
      %s142 = sphi 0, %s142
      %s144 = sphi 0, %s142
      %s145 = sphi 0, %s144
      %s159 = sphi 0, %s145
      %s163 = sphi 0, %s163
      %s165 = sphi 0, %s163
      %s166 = sphi 0, %s165
      %s180 = sphi 0, %s166
      %s184 = sphi 0, %s184
      %s186 = sphi 0, %s184
      %s187 = sphi 0, %s186
      %s201 = sphi 0, %s187
      %s207 = sphi 0, %s209
      %s210 = sphi 0, %s207
      %s211 = sphi 0, %s210
      %s227 = sphi 0, %s211
    $region4: #{tpu_custom_call.1} parent=1 // loop_header_branch
      %22 = sbr.rel (%p20) target = $region8
    $region5: #{tpu_custom_call.1} parent=1 // loop_body
      %s24 = ssub.s32 %s19, 1
      %s25 = ssub.s32 %s19, 2
      %s26 = sadd.s32 %s19, 1
      %s27 = ssub.s32 %s19, %s26
      %p28 = scmp.eq.s32.totalorder %s27, 0
      %s30 = sadd.s32 %s29, 1
      %s31 = scalar_select %p28, %s29, %s30
      %p34 = pneg %p28
      %p35 = scmp.eq.s32.totalorder %s19, 1
      %p36 = por %p34, %p35
      %p37 = scmp.ne.s32.totalorder %s29, %s32
      %p38 = scmp.eq.s32.totalorder %s19, 0
      %p39 = por %p37, %p38
      %p40 = scmp.ne.s32.totalorder %s29, %s32
      %p41 = scmp.eq.s32.totalorder %s24, 1
      %p42 = por %p40, %p41
      %p43 = scmp.ne.s32.totalorder %s32, %s33
      %p44 = scmp.eq.s32.totalorder %s24, 0
      %p45 = por %p43, %p44
      %p46 = scmp.ne.s32.totalorder %s32, %s33
      %p47 = scmp.eq.s32.totalorder %s25, 1
      %p48 = por %p46, %p47
      %p50 = scmp.ne.s32.totalorder %s33, %s49
      %p51 = scmp.eq.s32.totalorder %s25, 0
      %p52 = por %p50, %p51
      %s53 = ssub.s32 %s19, %s26
      %p54 = scmp.eq.s32.totalorder %s53, 0
      %s56 = sadd.s32 %s55, 1
      %s57 = scalar_select %p54, %s55, %s56
      %p60 = pneg %p54
      %p61 = scmp.eq.s32.totalorder %s19, 1
      %p62 = por %p60, %p61
      %p63 = scmp.ne.s32.totalorder %s55, %s58
      %p64 = scmp.eq.s32.totalorder %s19, 0
      %p65 = por %p63, %p64
      %p66 = scmp.ne.s32.totalorder %s55, %s58
      %p67 = scmp.eq.s32.totalorder %s24, 1
      %p68 = por %p66, %p67
      %p69 = scmp.ne.s32.totalorder %s58, %s59
      %p70 = scmp.eq.s32.totalorder %s24, 0
      %p71 = por %p69, %p70
      %p72 = scmp.ne.s32.totalorder %s58, %s59
      %p73 = scmp.eq.s32.totalorder %s25, 1
      %p74 = por %p72, %p73
      %p76 = scmp.ne.s32.totalorder %s59, %s75
      %p77 = scmp.eq.s32.totalorder %s25, 0
      %p78 = por %p76, %p77
      %s80 = sadd.s32 %s79, 1
      %p83 = scmp.eq.s32.totalorder %s19, 1
      %p84 = scmp.ne.s32.totalorder %s79, %s81
      %p85 = scmp.eq.s32.totalorder %s19, 0
      %p86 = por %p84, %p85
      %p87 = scmp.ne.s32.totalorder %s79, %s81
      %p88 = scmp.eq.s32.totalorder %s24, 1
      %p89 = por %p87, %p88
      %p90 = scmp.ne.s32.totalorder %s81, %s82
      %p91 = scmp.eq.s32.totalorder %s24, 0
      %p92 = por %p90, %p91
      %p93 = scmp.ne.s32.totalorder %s81, %s82
      %p94 = scmp.eq.s32.totalorder %s25, 1
      %p95 = por %p93, %p94
      %p97 = scmp.ne.s32.totalorder %s82, %s96
      %p98 = scmp.eq.s32.totalorder %s25, 0
      %p99 = por %p97, %p98
      %s101 = sadd.s32 %s100, 1
      %p104 = scmp.eq.s32.totalorder %s19, 1
      %p105 = scmp.ne.s32.totalorder %s100, %s102
      %p106 = scmp.eq.s32.totalorder %s19, 0
      %p107 = por %p105, %p106
      %p108 = scmp.ne.s32.totalorder %s100, %s102
      %p109 = scmp.eq.s32.totalorder %s24, 1
      %p110 = por %p108, %p109
      %p111 = scmp.ne.s32.totalorder %s102, %s103
      %p112 = scmp.eq.s32.totalorder %s24, 0
      %p113 = por %p111, %p112
      %p114 = scmp.ne.s32.totalorder %s102, %s103
      %p115 = scmp.eq.s32.totalorder %s25, 1
      %p116 = por %p114, %p115
      %p118 = scmp.ne.s32.totalorder %s103, %s117
      %p119 = scmp.eq.s32.totalorder %s25, 0
      %p120 = por %p118, %p119
      %s122 = sadd.s32 %s121, 1
      %p125 = scmp.eq.s32.totalorder %s19, 1
      %p126 = scmp.ne.s32.totalorder %s121, %s123
      %p127 = scmp.eq.s32.totalorder %s19, 0
      %p128 = por %p126, %p127
      %p129 = scmp.ne.s32.totalorder %s121, %s123
      %p130 = scmp.eq.s32.totalorder %s24, 1
      %p131 = por %p129, %p130
      %p132 = scmp.ne.s32.totalorder %s123, %s124
      %p133 = scmp.eq.s32.totalorder %s24, 0
      %p134 = por %p132, %p133
      %p135 = scmp.ne.s32.totalorder %s123, %s124
      %p136 = scmp.eq.s32.totalorder %s25, 1
      %p137 = por %p135, %p136
      %p139 = scmp.ne.s32.totalorder %s124, %s138
      %p140 = scmp.eq.s32.totalorder %s25, 0
      %p141 = por %p139, %p140
      %s143 = sadd.s32 %s142, 1
      %p146 = scmp.eq.s32.totalorder %s19, 1
      %p147 = scmp.ne.s32.totalorder %s142, %s144
      %p148 = scmp.eq.s32.totalorder %s19, 0
      %p149 = por %p147, %p148
      %p150 = scmp.ne.s32.totalorder %s142, %s144
      %p151 = scmp.eq.s32.totalorder %s24, 1
      %p152 = por %p150, %p151
      %p153 = scmp.ne.s32.totalorder %s144, %s145
      %p154 = scmp.eq.s32.totalorder %s24, 0
      %p155 = por %p153, %p154
      %p156 = scmp.ne.s32.totalorder %s144, %s145
      %p157 = scmp.eq.s32.totalorder %s25, 1
      %p158 = por %p156, %p157
      %p160 = scmp.ne.s32.totalorder %s145, %s159
      %p161 = scmp.eq.s32.totalorder %s25, 0
      %p162 = por %p160, %p161
      %s164 = sadd.s32 %s163, 1
      %p167 = scmp.eq.s32.totalorder %s19, 1
      %p168 = scmp.ne.s32.totalorder %s163, %s165
      %p169 = scmp.eq.s32.totalorder %s19, 0
      %p170 = por %p168, %p169
      %p171 = scmp.ne.s32.totalorder %s163, %s165
      %p172 = scmp.eq.s32.totalorder %s24, 1
      %p173 = por %p171, %p172
      %p174 = scmp.ne.s32.totalorder %s165, %s166
      %p175 = scmp.eq.s32.totalorder %s24, 0
      %p176 = por %p174, %p175
      %p177 = scmp.ne.s32.totalorder %s165, %s166
      %p178 = scmp.eq.s32.totalorder %s25, 1
      %p179 = por %p177, %p178
      %p181 = scmp.ne.s32.totalorder %s166, %s180
      %p182 = scmp.eq.s32.totalorder %s25, 0
      %p183 = por %p181, %p182
      %s185 = sadd.s32 %s184, 1
      %p188 = scmp.eq.s32.totalorder %s19, 1
      %p189 = scmp.ne.s32.totalorder %s184, %s186
      %p190 = scmp.eq.s32.totalorder %s19, 0
      %p191 = por %p189, %p190
      %p192 = scmp.ne.s32.totalorder %s184, %s186
      %p193 = scmp.eq.s32.totalorder %s24, 1
      %p194 = por %p192, %p193
      %p195 = scmp.ne.s32.totalorder %s186, %s187
      %p196 = scmp.eq.s32.totalorder %s24, 0
      %p197 = por %p195, %p196
      %p198 = scmp.ne.s32.totalorder %s186, %s187
      %p199 = scmp.eq.s32.totalorder %s25, 1
      %p200 = por %p198, %p199
      %p202 = scmp.ne.s32.totalorder %s187, %s201
      %p203 = scmp.eq.s32.totalorder %s25, 0
      %p204 = por %p202, %p203
      %s205 = ssub.s32 %s19, %s26
      %p206 = scmp.eq.s32.totalorder %s205, 0
      %s208 = sadd.s32 %s207, 1
      %s209 = scalar_select %p206, %s207, %s208
      %p212 = pneg %p206
      %p213 = scmp.eq.s32.totalorder %s19, 1
      %p214 = por %p212, %p213
      %p215 = scmp.ne.s32.totalorder %s207, %s210
      %p216 = scmp.eq.s32.totalorder %s19, 0
      %p217 = por %p215, %p216
      %p218 = scmp.ne.s32.totalorder %s207, %s210
      %p219 = scmp.eq.s32.totalorder %s24, 1
      %p220 = por %p218, %p219
      %p221 = scmp.ne.s32.totalorder %s210, %s211
      %p222 = scmp.eq.s32.totalorder %s24, 0
      %p223 = por %p221, %p222
      %p224 = scmp.ne.s32.totalorder %s210, %s211
      %p225 = scmp.eq.s32.totalorder %s25, 1
      %p226 = por %p224, %p225
      %p228 = scmp.ne.s32.totalorder %s211, %s227
      %p229 = scmp.eq.s32.totalorder %s25, 0
      %p230 = por %p228, %p229
      %p231 = scmp.le.s32.totalorder 1, %s19
      %p232 = scmp.lt.s32.totalorder %s19, 3
      %p233 = pnand %p231, %p232
      %p234 = pneg %p233
      // Predicated region
      $region9: #{tpu_custom_call.1} parent=5 // pred_check
        _
      $region10: #{tpu_custom_call.1} parent=5 // pred_check_branch
        %236 = sbr.rel (%p233) target = $region12
      $region11: #{tpu_custom_call.1} parent=5 // pred_region
        %s237 = ssub.s32 %s19, 1
        // Predicated region
        $region13: #{tpu_custom_call.1} parent=11 // pred_check
          %p238 = pneg %p92
        $region14: #{tpu_custom_call.1} parent=11 // pred_check_branch
          %240 = sbr.rel (%p238) target = $region16
        $region15: #{tpu_custom_call.1} parent=11 // pred_region
          %s242 = ssub.s32 128, 128
          %243 = vsyncadd [#allocation3], %s242
          %s244 = sshll.u32 [#allocation2], 4
          %s245 = int_to_ptr.vmem [resolvable:$true] %s244
          %250 = dma.hbm_to_vmem [thread:$0]  %s2, 128, %s245, [#allocation3], 64, 64, 4
        $region16: #{tpu_custom_call.1} parent=11 // pred_fallthru
          _
        // Predicated region
        $region17: #{tpu_custom_call.1} parent=11 // pred_check
          %p251 = pneg %p113
        $region18: #{tpu_custom_call.1} parent=11 // pred_check_branch
          %253 = sbr.rel (%p251) target = $region20
        $region19: #{tpu_custom_call.1} parent=11 // pred_region
          _
        $region20: #{tpu_custom_call.1} parent=11 // pred_fallthru
          _
        // Predicated region
        $region21: #{tpu_custom_call.1} parent=11 // pred_check
          %p254 = pneg %p134
        $region22: #{tpu_custom_call.1} parent=11 // pred_check_branch
          %256 = sbr.rel (%p254) target = $region24
        $region23: #{tpu_custom_call.1} parent=11 // pred_region
          _
        $region24: #{tpu_custom_call.1} parent=11 // pred_fallthru
          _
        // Predicated region
        $region25: #{tpu_custom_call.1} parent=11 // pred_check
          %p257 = pneg %p155
        $region26: #{tpu_custom_call.1} parent=11 // pred_check_branch
          %259 = sbr.rel (%p257) target = $region28
        $region27: #{tpu_custom_call.1} parent=11 // pred_region
          %s261 = ssub.s32 1024, 1024
          %262 = vsyncadd [#allocation6], %s261
          %s263 = sshll.u32 [#allocation5], 4
          %s264 = int_to_ptr.vmem [resolvable:$true] %s263
          %269 = dma.hbm_to_vmem [thread:$0]  %s5, 1024, %s264, [#allocation6], 64, 64, 4
        $region28: #{tpu_custom_call.1} parent=11 // pred_fallthru
          _
        // Predicated region
        $region29: #{tpu_custom_call.1} parent=11 // pred_check
          %p270 = pneg %p176
        $region30: #{tpu_custom_call.1} parent=11 // pred_check_branch
          %272 = sbr.rel (%p270) target = $region32
        $region31: #{tpu_custom_call.1} parent=11 // pred_region
          %s274 = ssub.s32 1024, 1024
          %275 = vsyncadd [#allocation6], %s274
          %s276 = sshll.u32 [#allocation7], 4
          %s277 = int_to_ptr.vmem [resolvable:$true] %s276
          %282 = dma.hbm_to_vmem [thread:$0]  %s6, 1024, %s277, [#allocation6], 64, 64, 4
        $region32: #{tpu_custom_call.1} parent=11 // pred_fallthru
          _
        // Predicated region
        $region33: #{tpu_custom_call.1} parent=11 // pred_check
          %p283 = pneg %p197
        $region34: #{tpu_custom_call.1} parent=11 // pred_check_branch
          %285 = sbr.rel (%p283) target = $region36
        $region35: #{tpu_custom_call.1} parent=11 // pred_region
          _
        $region36: #{tpu_custom_call.1} parent=11 // pred_fallthru
          _
      $region12: #{tpu_custom_call.1} parent=5 // pred_fallthru
        _
      %p286 = scmp.lt.s32.totalorder %s19, 2
      // Predicated region
      $region37: #{tpu_custom_call.1} parent=5 // pred_check
        %p287 = pneg %p286
      $region38: #{tpu_custom_call.1} parent=5 // pred_check_branch
        %289 = sbr.rel (%p287) target = $region40
      $region39: #{tpu_custom_call.1} parent=5 // pred_region
        // Predicated region
        $region41: #{tpu_custom_call.1} parent=39 // pred_check
          %p290 = pneg %p39
        $region42: #{tpu_custom_call.1} parent=39 // pred_check_branch
          %292 = sbr.rel (%p290) target = $region44
        $region43: #{tpu_custom_call.1} parent=39 // pred_region
          %s293 = smul.u32 2, %s19
          %p294 = scmp.lt.s32.totalorder %s293, 3
          %s295 = scalar_select %p294, %s293, 3
          %s296 = smul.addr %s295, 8
          %s297 = scalar_lea.vmem %s0, %s296
          %s298 = smul.u32 2, %s19
        $region44: #{tpu_custom_call.1} parent=39 // pred_fallthru
          _
        // Predicated region
        $region45: #{tpu_custom_call.1} parent=39 // pred_check
          %p299 = pneg %p65
        $region46: #{tpu_custom_call.1} parent=39 // pred_check_branch
          %301 = sbr.rel (%p299) target = $region48
        $region47: #{tpu_custom_call.1} parent=39 // pred_region
          %s302 = smul.u32 2, %s19
          %p303 = scmp.lt.s32.totalorder %s302, 3
          %s304 = scalar_select %p303, %s302, 3
          %s305 = smul.addr %s304, 4
          %s306 = scalar_lea.vmem %s1, %s305
          %s307 = smul.u32 2, %s19
        $region48: #{tpu_custom_call.1} parent=39 // pred_fallthru
          _
      $region40: #{tpu_custom_call.1} parent=5 // pred_fallthru
        _
      %p308 = scmp.le.s32.totalorder 1, %s19
      %p309 = scmp.lt.s32.totalorder %s19, 3
      %p310 = pnand %p308, %p309
      %p311 = pneg %p310
      // Predicated region
      $region49: #{tpu_custom_call.1} parent=5 // pred_check
        _
      $region50: #{tpu_custom_call.1} parent=5 // pred_check_branch
        %313 = sbr.rel (%p310) target = $region52
      $region51: #{tpu_custom_call.1} parent=5 // pred_region
        %s314 = ssub.s32 %s19, 1
        // Predicated region
        $region53: #{tpu_custom_call.1} parent=51 // pred_check
          %p315 = pneg %p92
        $region54: #{tpu_custom_call.1} parent=51 // pred_check_branch
          %317 = sbr.rel (%p315) target = $region56
        $region55: #{tpu_custom_call.1} parent=51 // pred_region
          %318 = dma.done [#allocation3], 128
        $region56: #{tpu_custom_call.1} parent=51 // pred_fallthru
          _
        // Predicated region
        $region57: #{tpu_custom_call.1} parent=51 // pred_check
          %p319 = pneg %p155
        $region58: #{tpu_custom_call.1} parent=51 // pred_check_branch
          %321 = sbr.rel (%p319) target = $region60
        $region59: #{tpu_custom_call.1} parent=51 // pred_region
          %322 = dma.done [#allocation6], 1024
        $region60: #{tpu_custom_call.1} parent=51 // pred_fallthru
          _
        // Predicated region
        $region61: #{tpu_custom_call.1} parent=51 // pred_check
          %p323 = pneg %p176
        $region62: #{tpu_custom_call.1} parent=51 // pred_check_branch
          %325 = sbr.rel (%p323) target = $region64
        $region63: #{tpu_custom_call.1} parent=51 // pred_region
          %326 = dma.done [#allocation6], 1024
        $region64: #{tpu_custom_call.1} parent=51 // pred_fallthru
          _
        %s327 = smul.u32 2, %s24
        %p328 = scmp.lt.s32.totalorder %s327, 3
        %s329 = scalar_select %p328, %s327, 3
        %s330 = smul.addr %s329, 8
        %s331 = scalar_lea.vmem %s0, %s330
        %p332 = pneg %p45
        %p333 = pneg %p42
        %s334 = smul.u32 2, %s24
        %p335 = scmp.lt.s32.totalorder %s334, 3
        %s336 = scalar_select %p335, %s334, 3
        %s337 = smul.addr %s336, 4
        %s338 = scalar_lea.vmem %s1, %s337
        %p339 = pneg %p71
        %p340 = pneg %p68
        %p341 = pneg %p92
        %p342 = pneg %p89
        %p343 = pneg %p113
        %p344 = pneg %p110
        %p345 = pneg %p134
        %p346 = pneg %p131
        %p347 = pneg %p155
        %p348 = pneg %p152
        %p349 = pneg %p176
        %p350 = pneg %p173
        %p351 = pneg %p197
        %p352 = pneg %p194
        %p353 = pneg %p223
        %p354 = pneg %p220
        %s355 = sand.u32 %s210, 1
        %s356 = scalar_lea.sflag [#allocation4], %s355
        %s357 = sand.u32 %s210, 1
        %s358 = smul.addr %s357, 8
        %s359 = scalar_lea.vmem [#allocation8], %s358
        %s360 = smul.u32 2, %s24
        %p361 = scmp.lt.s32.totalorder %s360, 3
        %s362 = scalar_select %p361, %s360, 3
        %s363 = smul.addr %s362, 8
        %s364 = scalar_lea.vmem %s0, %s363
        %s365 = smul.u32 2, %s24
        %s366 = smul.u32 2, %s24
        %p367 = scmp.lt.s32.totalorder %s366, 3
        %s368 = scalar_select %p367, %s366, 3
        %s369 = smul.addr %s368, 4
        %s370 = scalar_lea.vmem %s1, %s369
        %s371 = smul.u32 2, %s24
        %s372 = smul.u32 2, %s24
        %v374 = vld [vmem:[%s364] sm:$0xff]
        %v375 = vld [vmem:[%s364 + $0x8] sm:$0xff]
        %v376 = vlaneseq
        %v377 = vand.u32 %v376, 127
        %378 = vset.pattern.permute.xlu0 0
        %379 = vperm.xlu0 %378, %v374
        %v380 = vpop.permute.xlu0 %379
        %381 = vset.pattern.permute.xlu0 0
        %382 = vperm.xlu0 %381, %v375
        %v383 = vpop.permute.xlu0 %382
        %vm384 = vcmp.eq.s32.totalorder %v377, %v380
        %vm385 = vcmp.eq.s32.totalorder %v377, %v383
        %v386 = vsel %vm384, 1, 0
        %v387 = vsel %vm385, 1, 0
        %v388 = vcvt.s32.f32 %v386
        %v389 = vcvt.s32.f32 %v387
        %v390 = vld [vmem:[%s370] sm:$0xf]
        %v391 = vld [vmem:[%s370 + $0x4] sm:$0xf]
        %v392 = vld [vmem:[#allocation2] sm:$0xf]
        %v393 = vld [vmem:[#allocation2 + $0x4] sm:$0xf]
        %v394 = vpack.c.bf16 %v389, %v388
        %v395 = vld [vmem:[%s3] sm:$0xf]
        %v396 = vld [vmem:[%s3 + $0x4] sm:$0xf]
        %v397 = vld [vmem:[%s3 + $0x8] sm:$0xf]
        %v398 = vld [vmem:[%s3 + $0xc] sm:$0xf]
        %v399 = vld [vmem:[%s3 + $0x10] sm:$0xf]
        %v400 = vld [vmem:[%s3 + $0x14] sm:$0xf]
        %v401 = vld [vmem:[%s3 + $0x18] sm:$0xf]
        %v402 = vld [vmem:[%s3 + $0x1c] sm:$0xf]
        %v403 = vld [vmem:[%s3 + $0x20] sm:$0xf]
        %v404 = vld [vmem:[%s3 + $0x24] sm:$0xf]
        %v405 = vld [vmem:[%s3 + $0x28] sm:$0xf]
        %v406 = vld [vmem:[%s3 + $0x2c] sm:$0xf]
        %v407 = vld [vmem:[%s3 + $0x30] sm:$0xf]
        %v408 = vld [vmem:[%s3 + $0x34] sm:$0xf]
        %v409 = vld [vmem:[%s3 + $0x38] sm:$0xf]
        %v410 = vld [vmem:[%s3 + $0x3c] sm:$0xf]
        %v427 = vunpack.c.l.b16 %v395
        %v428 = vunpack.c.l.b16 %v396
        %v429 = vunpack.c.l.b16 %v397
        %v430 = vunpack.c.l.b16 %v398
        %v431 = vunpack.c.l.b16 %v399
        %v432 = vunpack.c.l.b16 %v400
        %v433 = vunpack.c.l.b16 %v401
        %v434 = vunpack.c.l.b16 %v402
        %v435 = vunpack.c.l.b16 %v403
        %v436 = vunpack.c.l.b16 %v404
        %v437 = vunpack.c.l.b16 %v405
        %v438 = vunpack.c.l.b16 %v406
        %v439 = vunpack.c.l.b16 %v407
        %v440 = vunpack.c.l.b16 %v408
        %v441 = vunpack.c.l.b16 %v409
        %v442 = vunpack.c.l.b16 %v410
        %v443 = vpack.c.b16 %v428, %v427
        %v444 = vpack.c.b16 %v430, %v429
        %v445 = vpack.c.b16 %v432, %v431
        %v446 = vpack.c.b16 %v434, %v433
        %v447 = vpack.c.b16 %v436, %v435
        %v448 = vpack.c.b16 %v438, %v437
        %v449 = vpack.c.b16 %v440, %v439
        %v450 = vpack.c.b16 %v442, %v441
        %459 = vmatprep.subr.bf16.mxu0 0
        %460 = vmatpush1.bf16.msra.mxu0 %v443
        %461 = vmatprep.subr.bf16.mxu0 0
        %462 = vmatpush1.bf16.msra.mxu0 %v444
        %463 = vmatprep.subr.bf16.mxu0 0
        %464 = vmatpush1.bf16.msra.mxu0 %v445
        %465 = vmatprep.subr.bf16.mxu0 0
        %466 = vmatpush1.bf16.msra.mxu0 %v446
        %467 = vmatprep.subr.bf16.mxu0 0
        %468 = vmatpush1.bf16.msra.mxu0 %v447
        %469 = vmatprep.subr.bf16.mxu0 0
        %470 = vmatpush1.bf16.msra.mxu0 %v448
        %471 = vmatprep.subr.bf16.mxu0 0
        %472 = vmatpush1.bf16.msra.mxu0 %v449
        %473 = vmatprep.subr.bf16.mxu0 0
        %474 = vmatpush1.bf16.msra.mxu0 %v450
        %475 = vmatprep.subr.bf16.mxu0 0
        %476 = vmatpush1.bf16.msra.mxu0 0
        %477 = vmatprep.subr.bf16.mxu0 0
        %478 = vmatpush1.bf16.msra.mxu0 0
        %479 = vmatprep.subr.bf16.mxu0 0
        %480 = vmatpush1.bf16.msra.mxu0 0
        %481 = vmatprep.subr.bf16.mxu0 0
        %482 = vmatpush1.bf16.msra.mxu0 0
        %483 = vmatprep.subr.bf16.mxu0 0
        %484 = vmatpush1.bf16.msra.mxu0 0
        %485 = vmatprep.subr.bf16.mxu0 0
        %486 = vmatpush1.bf16.msra.mxu0 0
        %487 = vmatprep.subr.bf16.mxu0 0
        %488 = vmatpush1.bf16.msra.mxu0 0
        %489 = vmatprep.subr.bf16.mxu0 0
        %490 = vmatpush1.bf16.msra.mxu0 0
        %491 = vmatprep.mubr.bf16.mxu0 0
        %492 = vmatmul.mubr.bf16.gmra.mrb[0].mxu0 %v394
        %v493 = vpop.f32.mrb[0].mxu0
        %v494 = vadd.f32 0.0, %v493
        %v495 = vpop.f32.mrb[0].mxu0
        %v496 = vpop.f32.mrb[0].mxu0
        %v497 = vadd.f32 0.0, %v496
        %v498 = vpop.f32.mrb[0].mxu0
        %499 = vdwg.mxu0
        %v502 = vunpack.c.l.b16 %v390
        %v503 = vunpack.c.l.b16 %v391
        %v504 = vpack.c.b16 %v503, %v502
        %v507 = vunpack.c.l.b16 %v392
        %v508 = vunpack.c.l.b16 %v393
        %v509 = vpack.c.b16 %v508, %v507
        %vm511 = vcmask 130048
        %v513 = vsel %vm511, %v504, 0
        %515 = vmatprep.subr.bf16.mxu0 0
        %516 = vmatpush1.bf16.msra.mxu0 %v509
        %517 = vmatprep.subr.bf16.mxu0 0
        %518 = vmatpush1.bf16.msra.mxu0 0
        %519 = vmatprep.subr.bf16.mxu0 0
        %520 = vmatpush1.bf16.msra.mxu0 0
        %521 = vmatprep.subr.bf16.mxu0 0
        %522 = vmatpush1.bf16.msra.mxu0 0
        %523 = vmatprep.subr.bf16.mxu0 0
        %524 = vmatpush1.bf16.msra.mxu0 0
        %525 = vmatprep.subr.bf16.mxu0 0
        %526 = vmatpush1.bf16.msra.mxu0 0
        %527 = vmatprep.subr.bf16.mxu0 0
        %528 = vmatpush1.bf16.msra.mxu0 0
        %529 = vmatprep.subr.bf16.mxu0 0
        %530 = vmatpush1.bf16.msra.mxu0 0
        %531 = vmatprep.subr.bf16.mxu0 0
        %532 = vmatpush1.bf16.msra.mxu0 0
        %533 = vmatprep.subr.bf16.mxu0 0
        %534 = vmatpush1.bf16.msra.mxu0 0
        %535 = vmatprep.subr.bf16.mxu0 0
        %536 = vmatpush1.bf16.msra.mxu0 0
        %537 = vmatprep.subr.bf16.mxu0 0
        %538 = vmatpush1.bf16.msra.mxu0 0
        %539 = vmatprep.subr.bf16.mxu0 0
        %540 = vmatpush1.bf16.msra.mxu0 0
        %541 = vmatprep.subr.bf16.mxu0 0
        %542 = vmatpush1.bf16.msra.mxu0 0
        %543 = vmatprep.subr.bf16.mxu0 0
        %544 = vmatpush1.bf16.msra.mxu0 0
        %545 = vmatprep.subr.bf16.mxu0 0
        %546 = vmatpush1.bf16.msra.mxu0 0
        %547 = vmatprep.mubr.bf16.mxu0 0
        %548 = vmatmul.mubr.bf16.gmra.mrb[0].mxu0 %v513
        %v549 = vpop.f32.mrb[0].mxu0
        %v550 = vadd.f32 %v494, %v549
        %v551 = vpop.f32.mrb[0].mxu0
        %v552 = vpop.f32.mrb[0].mxu0
        %v553 = vadd.f32 %v497, %v552
        %v554 = vpop.f32.mrb[0].mxu0
        %555 = vdwg.mxu0
        %v556 = vld [vmem:[%s4] sm:$0x1]
        %v557 = vlaneseq
        %v558 = vshrl.u32 %v557, 7
        %v559 = vsub.s32 0, %v558
        %v560 = vrot.slane %v556, %v559
        %v561 = vadd.f32 %v550, %v560
        %v562 = vadd.f32 %v553, %v560
        %v563 = vtanh.pop %v561
        %v564 = vtanh.pop %v562
        %v565 = vpack.c.bf16 %v564, %v563
        %v566 = vld [vmem:[#allocation5] sm:$0xf]
        %v567 = vld [vmem:[#allocation5 + $0x4] sm:$0xf]
        %v568 = vld [vmem:[#allocation5 + $0x8] sm:$0xf]
        %v569 = vld [vmem:[#allocation5 + $0xc] sm:$0xf]
        %v570 = vld [vmem:[#allocation5 + $0x10] sm:$0xf]
        %v571 = vld [vmem:[#allocation5 + $0x14] sm:$0xf]
        %v572 = vld [vmem:[#allocation5 + $0x18] sm:$0xf]
        %v573 = vld [vmem:[#allocation5 + $0x1c] sm:$0xf]
        %v574 = vld [vmem:[#allocation5 + $0x20] sm:$0xf]
        %v575 = vld [vmem:[#allocation5 + $0x24] sm:$0xf]
        %v576 = vld [vmem:[#allocation5 + $0x28] sm:$0xf]
        %v577 = vld [vmem:[#allocation5 + $0x2c] sm:$0xf]
        %v578 = vld [vmem:[#allocation5 + $0x30] sm:$0xf]
        %v579 = vld [vmem:[#allocation5 + $0x34] sm:$0xf]
        %v580 = vld [vmem:[#allocation5 + $0x38] sm:$0xf]
        %v581 = vld [vmem:[#allocation5 + $0x3c] sm:$0xf]
        %v582 = vld [vmem:[%s4 + $0x1] sm:$0x1]
        %v583 = vlaneseq
        %v584 = vshrl.u32 %v583, 7
        %v585 = vsub.s32 0, %v584
        %v586 = vrot.slane %v582, %v585
        %v603 = vunpack.c.l.b16 %v566
        %v604 = vunpack.c.l.b16 %v567
        %v605 = vunpack.c.l.b16 %v568
        %v606 = vunpack.c.l.b16 %v569
        %v607 = vunpack.c.l.b16 %v570
        %v608 = vunpack.c.l.b16 %v571
        %v609 = vunpack.c.l.b16 %v572
        %v610 = vunpack.c.l.b16 %v573
        %v611 = vunpack.c.l.b16 %v574
        %v612 = vunpack.c.l.b16 %v575
        %v613 = vunpack.c.l.b16 %v576
        %v614 = vunpack.c.l.b16 %v577
        %v615 = vunpack.c.l.b16 %v578
        %v616 = vunpack.c.l.b16 %v579
        %v617 = vunpack.c.l.b16 %v580
        %v618 = vunpack.c.l.b16 %v581
        %v619 = vpack.c.b16 %v604, %v603
        %v620 = vpack.c.b16 %v606, %v605
        %v621 = vpack.c.b16 %v608, %v607
        %v622 = vpack.c.b16 %v610, %v609
        %v623 = vpack.c.b16 %v612, %v611
        %v624 = vpack.c.b16 %v614, %v613
        %v625 = vpack.c.b16 %v616, %v615
        %v626 = vpack.c.b16 %v618, %v617
        %635 = vmatprep.subr.bf16.mxu0 0
        %636 = vmatpush1.bf16.msra.mxu0 %v619
        %637 = vmatprep.subr.bf16.mxu0 0
        %638 = vmatpush1.bf16.msra.mxu0 %v620
        %639 = vmatprep.subr.bf16.mxu0 0
        %640 = vmatpush1.bf16.msra.mxu0 %v621
        %641 = vmatprep.subr.bf16.mxu0 0
        %642 = vmatpush1.bf16.msra.mxu0 %v622
        %643 = vmatprep.subr.bf16.mxu0 0
        %644 = vmatpush1.bf16.msra.mxu0 %v623
        %645 = vmatprep.subr.bf16.mxu0 0
        %646 = vmatpush1.bf16.msra.mxu0 %v624
        %647 = vmatprep.subr.bf16.mxu0 0
        %648 = vmatpush1.bf16.msra.mxu0 %v625
        %649 = vmatprep.subr.bf16.mxu0 0
        %650 = vmatpush1.bf16.msra.mxu0 %v626
        %651 = vmatprep.subr.bf16.mxu0 0
        %652 = vmatpush1.bf16.msra.mxu0 0
        %653 = vmatprep.subr.bf16.mxu0 0
        %654 = vmatpush1.bf16.msra.mxu0 0
        %655 = vmatprep.subr.bf16.mxu0 0
        %656 = vmatpush1.bf16.msra.mxu0 0
        %657 = vmatprep.subr.bf16.mxu0 0
        %658 = vmatpush1.bf16.msra.mxu0 0
        %659 = vmatprep.subr.bf16.mxu0 0
        %660 = vmatpush1.bf16.msra.mxu0 0
        %661 = vmatprep.subr.bf16.mxu0 0
        %662 = vmatpush1.bf16.msra.mxu0 0
        %663 = vmatprep.subr.bf16.mxu0 0
        %664 = vmatpush1.bf16.msra.mxu0 0
        %665 = vmatprep.subr.bf16.mxu0 0
        %666 = vmatpush1.bf16.msra.mxu0 0
        %667 = vmatprep.mubr.bf16.mxu0 0
        %668 = vmatmul.mubr.bf16.gmra.mrb[0].mxu0 %v565
        %v669 = vpop.f32.mrb[0].mxu0
        %v670 = vadd.f32 %v586, %v669
        %v671 = vpop.f32.mrb[0].mxu0
        %v672 = vpop.f32.mrb[0].mxu0
        %v673 = vadd.f32 %v586, %v672
        %v674 = vpop.f32.mrb[0].mxu0
        %675 = vdwg.mxu0
        %v676 = vtanh.pop %v670
        %v677 = vtanh.pop %v673
        %v678 = vpack.c.bf16 %v677, %v676
        %v679 = vld [vmem:[#allocation7] sm:$0xf]
        %v680 = vld [vmem:[#allocation7 + $0x4] sm:$0xf]
        %v681 = vld [vmem:[#allocation7 + $0x8] sm:$0xf]
        %v682 = vld [vmem:[#allocation7 + $0xc] sm:$0xf]
        %v683 = vld [vmem:[#allocation7 + $0x10] sm:$0xf]
        %v684 = vld [vmem:[#allocation7 + $0x14] sm:$0xf]
        %v685 = vld [vmem:[#allocation7 + $0x18] sm:$0xf]
        %v686 = vld [vmem:[#allocation7 + $0x1c] sm:$0xf]
        %v687 = vld [vmem:[#allocation7 + $0x20] sm:$0xf]
        %v688 = vld [vmem:[#allocation7 + $0x24] sm:$0xf]
        %v689 = vld [vmem:[#allocation7 + $0x28] sm:$0xf]
        %v690 = vld [vmem:[#allocation7 + $0x2c] sm:$0xf]
        %v691 = vld [vmem:[#allocation7 + $0x30] sm:$0xf]
        %v692 = vld [vmem:[#allocation7 + $0x34] sm:$0xf]
        %v693 = vld [vmem:[#allocation7 + $0x38] sm:$0xf]
        %v694 = vld [vmem:[#allocation7 + $0x3c] sm:$0xf]
        %v695 = vld [vmem:[%s7] sm:$0x1]
        %v697 = vlaneseq
        %v698 = vshrl.u32 %v697, 7
        %v699 = vsub.s32 0, %v698
        %v700 = vrot.slane %v695, %v699
        %v718 = vunpack.c.l.b16 %v679
        %v719 = vunpack.c.l.b16 %v680
        %v720 = vunpack.c.l.b16 %v681
        %v721 = vunpack.c.l.b16 %v682
        %v722 = vunpack.c.l.b16 %v683
        %v723 = vunpack.c.l.b16 %v684
        %v724 = vunpack.c.l.b16 %v685
        %v725 = vunpack.c.l.b16 %v686
        %v726 = vunpack.c.l.b16 %v687
        %v727 = vunpack.c.l.b16 %v688
        %v728 = vunpack.c.l.b16 %v689
        %v729 = vunpack.c.l.b16 %v690
        %v730 = vunpack.c.l.b16 %v691
        %v731 = vunpack.c.l.b16 %v692
        %v732 = vunpack.c.l.b16 %v693
        %v733 = vunpack.c.l.b16 %v694
        %v734 = vpack.c.b16 %v719, %v718
        %v735 = vpack.c.b16 %v721, %v720
        %v736 = vpack.c.b16 %v723, %v722
        %v737 = vpack.c.b16 %v725, %v724
        %v738 = vpack.c.b16 %v727, %v726
        %v739 = vpack.c.b16 %v729, %v728
        %v740 = vpack.c.b16 %v731, %v730
        %v741 = vpack.c.b16 %v733, %v732
        %750 = vmatprep.subr.bf16.mxu0 0
        %751 = vmatpush1.bf16.msra.mxu0 %v734
        %752 = vmatprep.subr.bf16.mxu0 0
        %753 = vmatpush1.bf16.msra.mxu0 %v735
        %754 = vmatprep.subr.bf16.mxu0 0
        %755 = vmatpush1.bf16.msra.mxu0 %v736
        %756 = vmatprep.subr.bf16.mxu0 0
        %757 = vmatpush1.bf16.msra.mxu0 %v737
        %758 = vmatprep.subr.bf16.mxu0 0
        %759 = vmatpush1.bf16.msra.mxu0 %v738
        %760 = vmatprep.subr.bf16.mxu0 0
        %761 = vmatpush1.bf16.msra.mxu0 %v739
        %762 = vmatprep.subr.bf16.mxu0 0
        %763 = vmatpush1.bf16.msra.mxu0 %v740
        %764 = vmatprep.subr.bf16.mxu0 0
        %765 = vmatpush1.bf16.msra.mxu0 %v741
        %766 = vmatprep.subr.bf16.mxu0 0
        %767 = vmatpush1.bf16.msra.mxu0 0
        %768 = vmatprep.subr.bf16.mxu0 0
        %769 = vmatpush1.bf16.msra.mxu0 0
        %770 = vmatprep.subr.bf16.mxu0 0
        %771 = vmatpush1.bf16.msra.mxu0 0
        %772 = vmatprep.subr.bf16.mxu0 0
        %773 = vmatpush1.bf16.msra.mxu0 0
        %774 = vmatprep.subr.bf16.mxu0 0
        %775 = vmatpush1.bf16.msra.mxu0 0
        %776 = vmatprep.subr.bf16.mxu0 0
        %777 = vmatpush1.bf16.msra.mxu0 0
        %778 = vmatprep.subr.bf16.mxu0 0
        %779 = vmatpush1.bf16.msra.mxu0 0
        %780 = vmatprep.subr.bf16.mxu0 0
        %781 = vmatpush1.bf16.msra.mxu0 0
        %782 = vmatprep.mubr.bf16.mxu0 0
        %783 = vmatmul.mubr.bf16.gmra.mrb[0].mxu0 %v678
        %v784 = vpop.f32.mrb[0].mxu0
        %v785 = vadd.f32 %v700, %v784
        %v786 = vpop.f32.mrb[0].mxu0
        %v787 = vpop.f32.mrb[0].mxu0
        %v788 = vadd.f32 %v700, %v787
        %v789 = vpop.f32.mrb[0].mxu0
        %790 = vdwg.mxu0
        %vm791 = vcmp.lt.s32.totalorder %v377, 10
        %v792 = vsel %vm791, %v785, -1e+30
        %v793 = vsel %vm791, %v788, -1e+30
        %794 = vmax.xlane.f32.xlu0 %v792
        %v795 = vpop.xlane.xlu0 %794
        %796 = vmax.xlane.f32.xlu0 %v793
        %v797 = vpop.xlane.xlu0 %796
        %v798 = vsub.f32 %v792, %v795
        %v799 = vsub.f32 %v793, %v797
        %v800 = vmul.f32 %v798, 1.442695
        %v801 = vpow.pop %v800
        %v802 = vmul.f32 %v799, 1.442695
        %v803 = vpow.pop %v802
        %804 = vadd.xlane.f32.xlu0 %v801
        %v805 = vpop.xlane.xlu0 %804
        %806 = vadd.xlane.f32.xlu0 %v803
        %v807 = vpop.xlane.xlu0 %806
        %v808 = vrcp.pop %v805
        %v809 = vrcp.pop %v807
        %vm810 = vcmp.eq.s32.totalorder %v377, 10
        %v811 = vsel %vm810, 1, 0
        %v812 = vcvt.s32.f32 %v811
        %v813 = vmul.f32 %v785, %v812
        %v814 = vmul.f32 %v788, %v812
        %815 = vadd.xlane.f32.xlu0 %v813
        %v816 = vpop.xlane.xlu0 %815
        %817 = vadd.xlane.f32.xlu0 %v814
        %v818 = vpop.xlane.xlu0 %817
        %v819 = vxor.u32 %v816, 2147483648
        %v820 = vxor.u32 %v818, 2147483648
        %v821 = vmul.f32 %v819, 1.442695
        %v822 = vpow.pop %v821
        %v823 = vmul.f32 %v820, 1.442695
        %v824 = vpow.pop %v823
        %v825 = vadd.f32 %v822, 1.0
        %v826 = vadd.f32 %v824, 1.0
        %v827 = vrcp.pop %v825
        %v828 = vmul.f32 1.0, %v827
        %v829 = vrcp.pop %v826
        %v830 = vmul.f32 1.0, %v829
        %v831 = vsub.f32 1.0, %v828
        %v832 = vsub.f32 1.0, %v830
        %v833 = vmul.f32 %v831, %v808
        %v834 = vmul.f32 %v832, %v809
        %v835 = vmul.f32 %v801, %v833
        %v836 = vmul.f32 %v803, %v834
        %v837 = vmul.f32 %v828, %v388
        %v838 = vmul.f32 %v830, %v389
        %v839 = vadd.f32 %v835, %v837
        %v840 = vadd.f32 %v836, %v838
        %v841 = vpack.c.bf16 %v840, %v839
        %v843 = vunpack.c.l.b16 %v841
        %v844 = vunpack.c.h.b16 %v841
        %v845 = vpack.c.b16 %v843, %v843
        %v846 = vpack.c.b16 %v844, %v844
        %849 = vst [vmem:[%s359] sm:$0xf] %v845
        %850 = vst [vmem:[%s359 + $0x4] sm:$0xf] %v846
        %s851 = sand.u32 %s210, 1
        %s852 = scalar_lea.sflag [#allocation4], %s851
        %s853 = sand.u32 %s210, 1
        %s854 = smul.addr %s853, 8
        %s855 = scalar_lea.vmem [#allocation8], %s854
        // Predicated region
        $region65: #{tpu_custom_call.1} parent=51 // pred_check
          %p856 = pneg %p220
        $region66: #{tpu_custom_call.1} parent=51 // pred_check_branch
          %858 = sbr.rel (%p856) target = $region68
        $region67: #{tpu_custom_call.1} parent=51 // pred_region
          %s859 = smul.u32 2, %s24
          %s861 = ssub.s32 128, 128
          %862 = vsyncadd %s852, %s861
          %s863 = smul.addr %s859, 64
          %s864 = scalar_lea.hbm %s8, %s863
          %s865 = sshll.u32 %s855, 4
          %s866 = int_to_ptr.vmem [resolvable:$true] %s865
          %871 = dma.vmem_to_hbm [thread:$0]  %s866, 128, %s864, %s852, 64, 64, 4
        $region68: #{tpu_custom_call.1} parent=51 // pred_fallthru
          _
      $region52: #{tpu_custom_call.1} parent=5 // pred_fallthru
        _
      %p872 = scmp.le.s32.totalorder 2, %s19
      // Predicated region
      $region69: #{tpu_custom_call.1} parent=5 // pred_check
        %p873 = pneg %p872
      $region70: #{tpu_custom_call.1} parent=5 // pred_check_branch
        %875 = sbr.rel (%p873) target = $region72
      $region71: #{tpu_custom_call.1} parent=5 // pred_region
        %s876 = ssub.s32 %s19, 2
        // Predicated region
        $region73: #{tpu_custom_call.1} parent=71 // pred_check
          %p877 = pneg %p226
        $region74: #{tpu_custom_call.1} parent=71 // pred_check_branch
          %879 = sbr.rel (%p877) target = $region76
        $region75: #{tpu_custom_call.1} parent=71 // pred_region
          %s880 = sand.u32 %s211, 1
          %s881 = scalar_lea.sflag [#allocation4], %s880
          %s882 = sand.u32 %s211, 1
          %s883 = smul.addr %s882, 8
          %s884 = scalar_lea.vmem [#allocation8], %s883
          %885 = dma.done %s881, 128
        $region76: #{tpu_custom_call.1} parent=71 // pred_fallthru
          _
      $region72: #{tpu_custom_call.1} parent=5 // pred_fallthru
        _
    $region6: #{tpu_custom_call.1} parent=1 // loop_footer
      %s23 = sadd.s32 1, %s19
    $region7: #{tpu_custom_call.1} parent=1 // loop_footer_branch
      %18 = sbr.rel target = $region3
    $region8: #{tpu_custom_call.1} parent=1 // loop_exit
      _
    %886 = vsyncpa [#allocation3], 1
    %s887 = scalar_lea.sflag [#allocation3], 1
    %888 = vsyncpa %s887, 1
    %889 = vsyncpa [#allocation6], 1
    %890 = vsyncpa [#allocation4], 1
    %s891 = scalar_lea.sflag [#allocation4], 1
    %892 = vsyncpa %s891, 1

</llo_original>
